<compile_context>
chip_gen: v7x
topology: tpu7x:2x2x1
jax: 0.10.0
libtpu: 0.0.40
codegen_flags: <defaults>
</compile_context>

<pallas_src>
import jax
import jax.numpy as jnp
from jax.experimental import pallas as pl
from jax.experimental.pallas import tpu as pltpu


def _fused_affine_kernel(x_ref, w_ref, b_ref, o_ref):
    # x: (B, 2)   w: (2, 2) fused weight   b: (1, 2)   o: (B, 4)
    x = x_ref[...]
    w = w_ref[...]
    b = b_ref[...]
    # VPU broadcast-FMA form of x @ w + b (K=2, N=2): no MXU involvement.
    y = x[:, 0:1] * w[0:1, :] + x[:, 1:2] * w[1:2, :] + b   # (B, 2), f32
    # stack((h, h), dim=1) -> layers1 on each copy -> flatten:
    # both copies are identical, so the output is [y, y] along features.
    o_ref[:, 0:2] = y
    o_ref[:, 2:4] = y


def fuse_linear_params(w0, b0, w1, b1):
    """One-time fusion of Linear(2,3) followed by Linear(3,2) (no activation).

    w0: (3, 2)  b0: (3,)  w1: (2, 3)  b1: (2,)
    Returns W_fused (2, 2) and b_fused (1, 2) such that
        (x @ w0.T + b0) @ w1.T + b1 == x @ W_fused + b_fused.
    """
    w_fused = jnp.transpose(w0) @ jnp.transpose(w1)          # (2, 2)
    b_fused = (b0 @ jnp.transpose(w1) + b1).reshape(1, -1)   # (1, 2)
    return w_fused.astype(jnp.float32), b_fused.astype(jnp.float32)


def model_forward(x, w_fused, b_fused):
    """x: (B, 2); w_fused: (2, 2); b_fused: (1, 2) -> (B, 4)."""
    B = x.shape[0]
    vmem = pl.BlockSpec(memory_space=pltpu.MemorySpace.VMEM)  # full-array block

    return pl.pallas_call(
        _fused_affine_kernel,
        out_shape=jax.ShapeDtypeStruct((B, 4), jnp.float32),
        in_specs=[vmem, vmem, vmem],
        out_specs=vmem,
        cost_estimate=pl.CostEstimate(
            flops=8 * B,            # 2 muls + 2 adds per (row, out-feature)
            transcendentals=0,
            bytes_accessed=4 * (2 * B + 4 + 2 + 4 * B),
        ),
    )(x, w_fused, b_fused)


def _torch_like_linear_init(key, out_features, in_features):
    # Deterministic init mimicking nn.Linear: U(-1/sqrt(in), 1/sqrt(in)).
    kw, kb = jax.random.split(key)
    bound = 1.0 / (in_features ** 0.5)
    w = jax.random.uniform(kw, (out_features, in_features),
                           minval=-bound, maxval=bound, dtype=jnp.float32)
    b = jax.random.uniform(kb, (out_features,),
                           minval=-bound, maxval=bound, dtype=jnp.float32)
    return w, b


if __name__ == "__main__":
    key = jax.random.PRNGKey(0)
    kx, k0, k1 = jax.random.split(key, 3)

    x = jax.random.normal(kx, (2, 2), dtype=jnp.float32)
    w0, b0 = _torch_like_linear_init(k0, 3, 2)   # layers  : Linear(2, 3)
    w1, b1 = _torch_like_linear_init(k1, 2, 3)   # layers1 : Linear(3, 2)

    # One-time algebraic fusion of the two Linear layers (no nonlinearity).
    w_fused, b_fused = fuse_linear_params(w0, b0, w1, b1)

    out = model_forward(x, w_fused, b_fused)
    jax.block_until_ready(out)

    # Pure-JAX reference check against the original (un-fused) two-layer form.
    h_ref = x @ w0.T + b0
    y_ref = h_ref @ w1.T + b1
    ref = jnp.concatenate([y_ref, y_ref], axis=-1)
    assert out.shape == (2, 4)
    assert jnp.allclose(out, ref, atol=1e-5, rtol=1e-4)

    print("KERNEL_OK")
</pallas_src>

<mosaic_0001>
module attributes {stable_mosaic.version = 11 : i64} {
  func.func @_fused_affine_kernel(%arg0: memref<2x2xf32, #tpu.memory_space<vmem>>, %arg1: memref<2x2xf32, #tpu.memory_space<vmem>>, %arg2: memref<1x2xf32, #tpu.memory_space<vmem>>, %arg3: memref<2x4xf32, #tpu.memory_space<vmem>>) attributes {dimension_semantics = [], scalar_prefetch = 0 : i64, scratch_operands = 0 : i64, tpu.core_type = #tpu.core_type<tc>} {
    %c0 = arith.constant 0 : index
    %c0_0 = arith.constant 0 : index
    %0 = vector.load %arg0[%c0, %c0_0] : memref<2x2xf32, #tpu.memory_space<vmem>>, vector<2x2xf32>
    %c0_1 = arith.constant 0 : index
    %c0_2 = arith.constant 0 : index
    %1 = vector.load %arg1[%c0_1, %c0_2] : memref<2x2xf32, #tpu.memory_space<vmem>>, vector<2x2xf32>
    %c0_3 = arith.constant 0 : index
    %c0_4 = arith.constant 0 : index
    %2 = vector.load %arg2[%c0_3, %c0_4] : memref<1x2xf32, #tpu.memory_space<vmem>>, vector<1x2xf32>
    %3 = vector.extract_strided_slice %0 {offsets = [0, 0], sizes = [2, 1], strides = [1, 1]} : vector<2x2xf32> to vector<2x1xf32>
    %4 = vector.extract_strided_slice %1 {offsets = [0, 0], sizes = [1, 2], strides = [1, 1]} : vector<2x2xf32> to vector<1x2xf32>
    %5 = vector.broadcast %3 : vector<2x1xf32> to vector<2x2xf32>
    %6 = vector.broadcast %4 : vector<1x2xf32> to vector<2x2xf32>
    %7 = arith.mulf %5, %6 : vector<2x2xf32>
    %8 = vector.extract_strided_slice %0 {offsets = [0, 1], sizes = [2, 1], strides = [1, 1]} : vector<2x2xf32> to vector<2x1xf32>
    %9 = vector.extract_strided_slice %1 {offsets = [1, 0], sizes = [1, 2], strides = [1, 1]} : vector<2x2xf32> to vector<1x2xf32>
    %10 = vector.broadcast %8 : vector<2x1xf32> to vector<2x2xf32>
    %11 = vector.broadcast %9 : vector<1x2xf32> to vector<2x2xf32>
    %12 = arith.mulf %10, %11 : vector<2x2xf32>
    %13 = arith.addf %7, %12 : vector<2x2xf32>
    %14 = vector.broadcast %2 : vector<1x2xf32> to vector<2x2xf32>
    %15 = arith.addf %13, %14 : vector<2x2xf32>
    %c0_5 = arith.constant 0 : index
    %c0_6 = arith.constant 0 : index
    %16 = vector.load %arg3[%c0_5, %c0_6] : memref<2x4xf32, #tpu.memory_space<vmem>>, vector<2x2xf32>
    tpu.vector_store %arg3[%c0_5, %c0_6], %15 {strides = array<i32>} : memref<2x4xf32, #tpu.memory_space<vmem>>, vector<2x2xf32>,
    %c0_7 = arith.constant 0 : index
    %c2 = arith.constant 2 : index
    %17 = vector.load %arg3[%c0_7, %c2] : memref<2x4xf32, #tpu.memory_space<vmem>>, vector<2x2xf32>
    tpu.vector_store %arg3[%c0_7, %c2], %15 {strides = array<i32>} : memref<2x4xf32, #tpu.memory_space<vmem>>, vector<2x2xf32>,
    return
  }
}

</mosaic_0001>

<llo_original>
// kernel: tpu_custom_call.1
$region0: #{tpu_custom_call.1}
  #allocation0 [shape = 'u32[]', space=smem, size = 0x4, offset = 0x4, fixed_abs, tag = 'smem constant byte address 0x4 - core index']
  #allocation1 [shape = 'u32[144,128]{1,0:T(1,128)}', space=vmem, size = 0x12000, scoped, tag = 'internal scratch']
  %s0 = inlined_call_operand.hbm [shape: f32[2,2], index: 0, kind: input, shape index: {}]
  %s1 = inlined_call_operand.vmem [shape: f32[2,2], index: 1, kind: input, shape index: {}]
  %s2 = inlined_call_operand.vmem [shape: f32[1,2], index: 2, kind: input, shape index: {}]
  %s3 = inlined_call_operand.hbm [shape: f32[2,4], index: 3, kind: output, shape index: {}]
  %s4 = sld [smem:[#allocation0]]
  $region26: #{tpu_custom_call.1} parent=0
    _
  %s6 = ssub.s32 1, %s4
  %s7 = scalar_select 0, %s6, %s4
  $region1: #{tpu_custom_call.1} parent=0
    #allocation2 [shape = 'u8[1024]{0}', space=vmem, size = 0x400, scoped, tag = 'input window, operand 0, single buffered']
    #allocation3 [shape = 's32[1]{0}', space=sflag, size = 0x4, scoped, tag = 'scoped memory for tpu_custom_call.1']
    #allocation4 [shape = 's32[1]{0}', space=sflag, size = 0x4, scoped, tag = 'scoped memory for tpu_custom_call.1']
    #allocation5 [shape = 'u8[1024]{0}', space=vmem, size = 0x400, scoped, tag = 'output window, operand 0, single buffered']
    %8 = vsyncpa [#allocation3], 0
    %9 = vsyncpa [#allocation4], 0
    // Predicated region
    $region2: #{tpu_custom_call.1} parent=1 // pred_check
      _
    $region3: #{tpu_custom_call.1} parent=1 // pred_check_branch
      %11 = sbr.rel (0) target = $region5
    $region4: #{tpu_custom_call.1} parent=1 // pred_region
      %s13 = ssub.s32 32, 32
      %14 = vsyncadd [#allocation3], %s13
      %s16 = sshll.u32 [#allocation2], 4
      %s17 = int_to_ptr.vmem [resolvable:$true] %s16
      %19 = dma.hbm_to_vmem [thread:$0]  %s0, 32, %s17, [#allocation3]
    $region5: #{tpu_custom_call.1} parent=1 // pred_fallthru
      _
    // Predicated region
    $region6: #{tpu_custom_call.1} parent=1 // pred_check
      _
    $region7: #{tpu_custom_call.1} parent=1 // pred_check_branch
      %21 = sbr.rel (0) target = $region9
    $region8: #{tpu_custom_call.1} parent=1 // pred_region
      _
    $region9: #{tpu_custom_call.1} parent=1 // pred_fallthru
      _
    // Predicated region
    $region10: #{tpu_custom_call.1} parent=1 // pred_check
      _
    $region11: #{tpu_custom_call.1} parent=1 // pred_check_branch
      %23 = sbr.rel (0) target = $region13
    $region12: #{tpu_custom_call.1} parent=1 // pred_region
      _
    $region13: #{tpu_custom_call.1} parent=1 // pred_fallthru
      _
    // Predicated region
    $region14: #{tpu_custom_call.1} parent=1 // pred_check
      _
    $region15: #{tpu_custom_call.1} parent=1 // pred_check_branch
      %25 = sbr.rel (0) target = $region17
    $region16: #{tpu_custom_call.1} parent=1 // pred_region
      %26 = dma.done [#allocation3], 32
    $region17: #{tpu_custom_call.1} parent=1 // pred_fallthru
      _
    %v27 = vld [vmem:[#allocation2] sm:$0x3]
    %v28 = vld [vmem:[%s1] sm:$0x3]
    %v29 = vld [vmem:[%s2] sm:$0x1]
    %31 = vset.pattern.permute.xlu0 0
    %32 = vperm.xlu0 %31, %v27
    %v33 = vpop.permute.xlu0 %32
    %v35 = vlaneseq
    %v36 = vshrl.u32 %v35, 7
    %v37 = vsub.s32 0, %v36
    %v38 = vrot.slane %v28, %v37
    %v39 = vmul.f32 %v33, %v38
    %40 = vset.pattern.permute.xlu0 1
    %41 = vperm.xlu0 %40, %v27
    %v42 = vpop.permute.xlu0 %41
    %v44 = vlaneseq
    %v45 = vshrl.u32 %v44, 7
    %v46 = vsub.s32 1, %v45
    %v47 = vrot.slane %v28, %v46
    %v48 = vmul.f32 %v42, %v47
    %v49 = vadd.f32 %v39, %v48
    %v51 = vlaneseq
    %v52 = vshrl.u32 %v51, 7
    %v53 = vsub.s32 0, %v52
    %v54 = vrot.slane %v29, %v53
    %v56 = vadd.f32 %v49, %v54
    %vm57 = vcmask 9216
    %58 = vst.msk [vmem:[#allocation5] sm:$0x3] %vm57, %v56
    %60 = vrot.lane.b32.xlu0 %v56, 2
    %v61 = vpop.permute.xlu0 %60
    %vm63 = vcmask 25616
    %64 = vst.msk [vmem:[#allocation5] sm:$0x3] %vm63, %v61
    // Predicated region
    $region18: #{tpu_custom_call.1} parent=1 // pred_check
      _
    $region19: #{tpu_custom_call.1} parent=1 // pred_check_branch
      %66 = sbr.rel (0) target = $region21
    $region20: #{tpu_custom_call.1} parent=1 // pred_region
      %s68 = ssub.s32 32, 32
      %69 = vsyncadd [#allocation4], %s68
      %s71 = sshll.u32 [#allocation5], 4
      %s72 = int_to_ptr.vmem [resolvable:$true] %s71
      %74 = dma.vmem_to_hbm [thread:$0]  %s72, 32, %s3, [#allocation4]
    $region21: #{tpu_custom_call.1} parent=1 // pred_fallthru
      _
    // Predicated region
    $region22: #{tpu_custom_call.1} parent=1 // pred_check
      _
    $region23: #{tpu_custom_call.1} parent=1 // pred_check_branch
      %76 = sbr.rel (0) target = $region25
    $region24: #{tpu_custom_call.1} parent=1 // pred_region
      %77 = dma.done [#allocation4], 32
    $region25: #{tpu_custom_call.1} parent=1 // pred_fallthru
      _
    %78 = vsyncpa [#allocation3], 1
    %79 = vsyncpa [#allocation4], 1

</llo_original>
